<compile_context>
chip_gen: v5e
topology: v5e:2x2
jax: 0.10.0
libtpu: 0.0.40
codegen_flags: <defaults>
</compile_context>

<pallas_src>
import jax
import jax.numpy as jnp
from jax.experimental import pallas as pl
from jax.experimental.pallas import tpu as pltpu


def conv3x3_relu_kernel(x_ref, w_ref, b_ref, o_ref):
    """One (batch, HW-tile) grid step.

    x_ref : (1, 9*Cin, T)   im2col'd input columns (VMEM, lane-dense)
    w_ref : (Cout, 9*Cin)   flattened conv weights (VMEM, grid-resident)
    b_ref : (Cout, 1)       bias (VMEM, grid-resident)
    o_ref : (1, Cout, T)    output tile (VMEM, lane-dense)
    """
    cols = x_ref[0]                                      # (9*Cin, T)
    # Single fused contraction on the MXU, f32 accumulation in registers.
    acc = jnp.dot(w_ref[...], cols,
                  preferred_element_type=jnp.float32)    # (Cout, T)
    acc = jnp.maximum(acc + b_ref[...], 0.0)             # bias + ReLU fused
    o_ref[...] = acc[None].astype(o_ref.dtype)           # one lane-dense store


def _pick_hw_tile(hw, cap=2048):
    """Largest multiple of 128 that divides hw and is <= cap; else full hw."""
    if hw % 128 != 0 or hw <= cap:
        return hw
    t = cap - (cap % 128)
    while t >= 128:
        if hw % t == 0:
            return t
        t -= 128
    return hw


def encoder_forward(x_nchw, w_hwio, bias):
    """Encoder.forward: x (N, Cin, H, W) -> (N, Cout, H, W)."""
    N, Cin, H, W = x_nchw.shape
    Cout = w_hwio.shape[3]
    HW = H * W
    K = 9 * Cin
    T = _pick_hw_tile(HW)

    # --- layout plumbing in the wrapper (no compute hoisted) ---------------
    # im2col straight from NCHW: (N, 9*Cin, H*W), tap-major (kh, kw, cin).
    x_pad = jnp.pad(x_nchw, ((0, 0), (0, 0), (1, 1), (1, 1)))
    taps = [x_pad[:, :, kh:kh + H, kw:kw + W]
            for kh in range(3) for kw in range(3)]       # 9 x (N, Cin, H, W)
    x_cols = jnp.stack(taps, axis=1).reshape(N, K, HW)

    # Weights HWIO -> (Cout, 9*Cin), tap-major to match x_cols ordering.
    w2d = jnp.transpose(w_hwio, (3, 0, 1, 2)).reshape(Cout, K)
    b2 = bias.reshape(Cout, 1)

    out_flat = pl.pallas_call(
        conv3x3_relu_kernel,
        out_shape=jax.ShapeDtypeStruct((N, Cout, HW), x_nchw.dtype),
        grid_spec=pltpu.PrefetchScalarGridSpec(
            num_scalar_prefetch=0,
            grid=(N, HW // T),
            in_specs=[
                pl.BlockSpec((1, K, T), lambda n, t: (n, 0, t)),
                pl.BlockSpec((Cout, K), lambda n, t: (0, 0)),
                pl.BlockSpec((Cout, 1), lambda n, t: (0, 0)),
            ],
            out_specs=pl.BlockSpec((1, Cout, T), lambda n, t: (n, 0, t)),
        ),
        compiler_params=pltpu.CompilerParams(
            dimension_semantics=("parallel", "parallel")),
    )(x_cols, w2d, b2)

    # Free reshape back to PyTorch's NCHW convention (no transpose needed).
    return out_flat.reshape(N, Cout, H, W)


def reference_forward(x_nchw, w_hwio, bias):
    """Pure-JAX reference matching torch Conv2d(3x3, pad=1) + ReLU."""
    Cout = w_hwio.shape[3]
    w_oihw = jnp.transpose(w_hwio, (3, 2, 0, 1))
    y = jax.lax.conv_general_dilated(
        x_nchw, w_oihw, window_strides=(1, 1), padding="SAME",
        dimension_numbers=("NCHW", "OIHW", "NCHW"))
    y = y + bias.reshape(1, Cout, 1, 1)
    return jnp.maximum(y, 0.0)


if __name__ == "__main__":
    # Small shapes consistent with the module's NCHW expectation.
    N, Cin, H, W, Cout = 2, 4, 16, 16, 8

    key = jax.random.PRNGKey(0)
    kx, kw, kb = jax.random.split(key, 3)
    x = jax.random.normal(kx, (N, Cin, H, W), dtype=jnp.float32)
    # Deterministic synthetic parameters (shapes from Conv2d(Cin, Cout, 3)).
    w = jax.random.normal(kw, (3, 3, Cin, Cout), dtype=jnp.float32) * 0.1
    b = jax.random.normal(kb, (Cout,), dtype=jnp.float32) * 0.1

    out = jax.block_until_ready(encoder_forward(x, w, b))
    ref = jax.block_until_ready(reference_forward(x, w, b))

    assert out.shape == (N, Cout, H, W), out.shape
    assert jnp.allclose(out, ref, atol=1e-4, rtol=1e-4), "mismatch vs reference"

    print("KERNEL_OK")
</pallas_src>

<mosaic_0001>
module attributes {stable_mosaic.version = 11 : i64} {
  func.func @conv3x3_relu_kernel(%arg0: i32, %arg1: i32, %arg2: memref<1x36x256xf32, #tpu.memory_space<vmem>>, %arg3: memref<8x36xf32, #tpu.memory_space<vmem>>, %arg4: memref<8x1xf32, #tpu.memory_space<vmem>>, %arg5: memref<1x8x256xf32, #tpu.memory_space<vmem>>) attributes {dimension_semantics = [#tpu.dimension_semantics<parallel>, #tpu.dimension_semantics<parallel>], iteration_bounds = array<i64: 2, 1>, scalar_prefetch = 0 : i64, scratch_operands = 0 : i64, tpu.core_type = #tpu.core_type<tc>, window_params = [{transform_indices = @transform_0, window_bounds = array<i64: 1, 36, 256>}, {pipeline_mode = #tpu.pipeline_mode<synchronous>, transform_indices = @transform_1, window_bounds = array<i64: 8, 36>}, {pipeline_mode = #tpu.pipeline_mode<synchronous>, transform_indices = @transform_2, window_bounds = array<i64: 8, 1>}, {transform_indices = @transform_3, window_bounds = array<i64: 1, 8, 256>}]} {
    %c0 = arith.constant 0 : index
    %c0_0 = arith.constant 0 : index
    %c0_1 = arith.constant 0 : index
    %0 = vector.load %arg2[%c0, %c0_0, %c0_1] : memref<1x36x256xf32, #tpu.memory_space<vmem>>, vector<1x36x256xf32>
    %1 = vector.shape_cast %0 : vector<1x36x256xf32> to vector<36x256xf32>
    %c0_2 = arith.constant 0 : index
    %c0_3 = arith.constant 0 : index
    %2 = vector.load %arg3[%c0_2, %c0_3] : memref<8x36xf32, #tpu.memory_space<vmem>>, vector<8x36xf32>
    %cst = arith.constant dense<0.000000e+00> : vector<8x256xf32>
    %3 = tpu.matmul %2, %1, %cst {dimension_numbers = #tpu.dot_dimension_numbers<[1], [0], [0], [1], [0, 0, 1, 1], [], []>} : vector<8x36xf32>, vector<36x256xf32>, vector<8x256xf32> -> vector<8x256xf32>
    %c0_4 = arith.constant 0 : index
    %c0_5 = arith.constant 0 : index
    %4 = vector.load %arg4[%c0_4, %c0_5] : memref<8x1xf32, #tpu.memory_space<vmem>>, vector<8x1xf32>
    %5 = vector.broadcast %4 : vector<8x1xf32> to vector<8x256xf32>
    %6 = arith.addf %3, %5 : vector<8x256xf32>
    %cst_6 = arith.constant 0.000000e+00 : f32
    %7 = vector.broadcast %cst_6 : f32 to vector<8x256xf32>
    %8 = arith.maximumf %6, %7 : vector<8x256xf32>
    %9 = vector.shape_cast %8 : vector<8x256xf32> to vector<1x8x256xf32>
    %c0_7 = arith.constant 0 : index
    %c0_8 = arith.constant 0 : index
    %c0_9 = arith.constant 0 : index
    %10 = vector.load %arg5[%c0_7, %c0_8, %c0_9] : memref<1x8x256xf32, #tpu.memory_space<vmem>>, vector<1x8x256xf32>
    tpu.vector_store %arg5[%c0_7, %c0_8, %c0_9], %9 {strides = array<i32>} : memref<1x8x256xf32, #tpu.memory_space<vmem>>, vector<1x8x256xf32>,
    return
  }
  func.func @transform_0(%arg0: i32, %arg1: i32) -> (i32, i32, i32) {
    %c0_i32 = arith.constant 0 : i32
    %c0_i32_0 = arith.constant 0 : i32
    return %arg0, %c0_i32, %arg1 : i32, i32, i32
  }
  func.func @transform_1(%arg0: i32, %arg1: i32) -> (i32, i32) {
    %c0_i32 = arith.constant 0 : i32
    %c0_i32_0 = arith.constant 0 : i32
    %c0_i32_1 = arith.constant 0 : i32
    return %c0_i32, %c0_i32_0 : i32, i32
  }
  func.func @transform_2(%arg0: i32, %arg1: i32) -> (i32, i32) {
    %c0_i32 = arith.constant 0 : i32
    %c0_i32_0 = arith.constant 0 : i32
    %c0_i32_1 = arith.constant 0 : i32
    return %c0_i32, %c0_i32_0 : i32, i32
  }
  func.func @transform_3(%arg0: i32, %arg1: i32) -> (i32, i32, i32) {
    %c0_i32 = arith.constant 0 : i32
    %c0_i32_0 = arith.constant 0 : i32
    return %arg0, %c0_i32, %arg1 : i32, i32, i32
  }
}

</mosaic_0001>

<llo_original>
// kernel: tpu_custom_call.1
$region0: #{tpu_custom_call.1}
  #allocation0 [shape = 'u32[]', space=smem, size = 0x4, offset = 0x4, fixed_abs, tag = 'smem constant byte address 0x4 - core index']
  #allocation1 [shape = 'u32[72,128]{1,0:T(1,128)}', space=vmem, size = 0x9000, scoped, tag = 'internal scratch']
  %s0 = inlined_call_operand.vmem [shape: f32[2,36,256], index: 0, kind: input, shape index: {}]
  %s1 = inlined_call_operand.vmem [shape: f32[8,36], index: 1, kind: input, shape index: {}]
  %s2 = inlined_call_operand.vmem [shape: f32[8,1], index: 2, kind: input, shape index: {}]
  %s3 = inlined_call_operand.hbm [shape: f32[2,8,256], index: 3, kind: output, shape index: {}]
  %s4 = sld [smem:[#allocation0]]
  $region45: #{tpu_custom_call.1} parent=0
    _
  %s6 = ssub.s32 1, %s4
  %s7 = scalar_select 0, %s6, %s4
  $region1: #{tpu_custom_call.1} parent=0
    #allocation2 [shape = 'u8[16384]{0}', space=vmem, size = 0x4000, scoped, tag = 'output window, operand 0']
    #allocation3 [shape = 's32[2]{0}', space=sflag, size = 0x8, scoped, tag = 'scoped memory for tpu_custom_call.1']
    %8 = vsyncpa [#allocation3], 0
    %s9 = scalar_lea.sflag [#allocation3], 1
    %10 = vsyncpa %s9, 0
    loop: start=0, step=1, limit=4
    $region2: #{tpu_custom_call.1} parent=1 // loop_pre_header
      _
    $region3: #{tpu_custom_call.1} parent=1 // loop_header
      %s12 = sphi 0, %s16
      %p13 = scmp.ge.s32.totalorder %s12, 4
      %s19 = sphi 0, %s31
      %s20 = sphi 0, %s27
      %s21 = sphi 0, %s19
      %s22 = sphi 0, %s20
      %s23 = sphi 0, %s21
      %s24 = sphi 0, %s22
      %s36 = sphi 0, %s38
      %s39 = sphi 0, %s36
      %s40 = sphi 0, %s39
      %s56 = sphi 0, %s40
      %s60 = sphi 0, %s60
      %s62 = sphi 0, %s60
      %s63 = sphi 0, %s62
      %s77 = sphi 0, %s63
      %s81 = sphi 0, %s81
      %s83 = sphi 0, %s81
      %s84 = sphi 0, %s83
      %s98 = sphi 0, %s84
      %s106 = sphi 0, %s108
      %s109 = sphi 0, %s106
      %s110 = sphi 0, %s109
      %s126 = sphi 0, %s110
    $region4: #{tpu_custom_call.1} parent=1 // loop_header_branch
      %15 = sbr.rel (%p13) target = $region8
    $region5: #{tpu_custom_call.1} parent=1 // loop_body
      %s17 = ssub.s32 %s12, 1
      %s18 = ssub.s32 %s12, 2
      %s25 = sadd.s32 1, %s20
      %p26 = scmp.ge.s32.totalorder %s25, 1
      %s27 = scalar_select %p26, 0, %s25
      %s28 = sadd.s32 1, %s19
      %s29 = scalar_select %p26, %s28, %s19
      %p30 = scmp.ge.s32.totalorder %s29, 2
      %s31 = scalar_select %p30, 0, %s29
      %s32 = ssub.s32 %s19, %s31
      %s33 = ssub.s32 %s20, %s27
      %s34 = sor.u32 %s32, %s33
      %p35 = scmp.eq.s32.totalorder %s34, 0
      %s37 = sadd.s32 %s36, 1
      %s38 = scalar_select %p35, %s36, %s37
      %p41 = pneg %p35
      %p42 = scmp.eq.s32.totalorder %s12, 1
      %p43 = por %p41, %p42
      %p44 = scmp.ne.s32.totalorder %s36, %s39
      %p45 = scmp.eq.s32.totalorder %s12, 0
      %p46 = por %p44, %p45
      %p47 = scmp.ne.s32.totalorder %s36, %s39
      %p48 = scmp.eq.s32.totalorder %s17, 1
      %p49 = por %p47, %p48
      %p50 = scmp.ne.s32.totalorder %s39, %s40
      %p51 = scmp.eq.s32.totalorder %s17, 0
      %p52 = por %p50, %p51
      %p53 = scmp.ne.s32.totalorder %s39, %s40
      %p54 = scmp.eq.s32.totalorder %s18, 1
      %p55 = por %p53, %p54
      %p57 = scmp.ne.s32.totalorder %s40, %s56
      %p58 = scmp.eq.s32.totalorder %s18, 0
      %p59 = por %p57, %p58
      %s61 = sadd.s32 %s60, 1
      %p64 = scmp.eq.s32.totalorder %s12, 1
      %p65 = scmp.ne.s32.totalorder %s60, %s62
      %p66 = scmp.eq.s32.totalorder %s12, 0
      %p67 = por %p65, %p66
      %p68 = scmp.ne.s32.totalorder %s60, %s62
      %p69 = scmp.eq.s32.totalorder %s17, 1
      %p70 = por %p68, %p69
      %p71 = scmp.ne.s32.totalorder %s62, %s63
      %p72 = scmp.eq.s32.totalorder %s17, 0
      %p73 = por %p71, %p72
      %p74 = scmp.ne.s32.totalorder %s62, %s63
      %p75 = scmp.eq.s32.totalorder %s18, 1
      %p76 = por %p74, %p75
      %p78 = scmp.ne.s32.totalorder %s63, %s77
      %p79 = scmp.eq.s32.totalorder %s18, 0
      %p80 = por %p78, %p79
      %s82 = sadd.s32 %s81, 1
      %p85 = scmp.eq.s32.totalorder %s12, 1
      %p86 = scmp.ne.s32.totalorder %s81, %s83
      %p87 = scmp.eq.s32.totalorder %s12, 0
      %p88 = por %p86, %p87
      %p89 = scmp.ne.s32.totalorder %s81, %s83
      %p90 = scmp.eq.s32.totalorder %s17, 1
      %p91 = por %p89, %p90
      %p92 = scmp.ne.s32.totalorder %s83, %s84
      %p93 = scmp.eq.s32.totalorder %s17, 0
      %p94 = por %p92, %p93
      %p95 = scmp.ne.s32.totalorder %s83, %s84
      %p96 = scmp.eq.s32.totalorder %s18, 1
      %p97 = por %p95, %p96
      %p99 = scmp.ne.s32.totalorder %s84, %s98
      %p100 = scmp.eq.s32.totalorder %s18, 0
      %p101 = por %p99, %p100
      %s102 = ssub.s32 %s19, %s31
      %s103 = ssub.s32 %s20, %s27
      %s104 = sor.u32 %s102, %s103
      %p105 = scmp.eq.s32.totalorder %s104, 0
      %s107 = sadd.s32 %s106, 1
      %s108 = scalar_select %p105, %s106, %s107
      %p111 = pneg %p105
      %p112 = scmp.eq.s32.totalorder %s12, 1
      %p113 = por %p111, %p112
      %p114 = scmp.ne.s32.totalorder %s106, %s109
      %p115 = scmp.eq.s32.totalorder %s12, 0
      %p116 = por %p114, %p115
      %p117 = scmp.ne.s32.totalorder %s106, %s109
      %p118 = scmp.eq.s32.totalorder %s17, 1
      %p119 = por %p117, %p118
      %p120 = scmp.ne.s32.totalorder %s109, %s110
      %p121 = scmp.eq.s32.totalorder %s17, 0
      %p122 = por %p120, %p121
      %p123 = scmp.ne.s32.totalorder %s109, %s110
      %p124 = scmp.eq.s32.totalorder %s18, 1
      %p125 = por %p123, %p124
      %p127 = scmp.ne.s32.totalorder %s110, %s126
      %p128 = scmp.eq.s32.totalorder %s18, 0
      %p129 = por %p127, %p128
      %p130 = scmp.le.s32.totalorder 1, %s12
      %p131 = scmp.lt.s32.totalorder %s12, 3
      %p132 = pnand %p130, %p131
      %p133 = pneg %p132
      // Predicated region
      $region9: #{tpu_custom_call.1} parent=5 // pred_check
        _
      $region10: #{tpu_custom_call.1} parent=5 // pred_check_branch
        %135 = sbr.rel (%p132) target = $region12
      $region11: #{tpu_custom_call.1} parent=5 // pred_region
        %s136 = ssub.s32 %s12, 1
        // Predicated region
        $region13: #{tpu_custom_call.1} parent=11 // pred_check
          %p137 = pneg %p73
        $region14: #{tpu_custom_call.1} parent=11 // pred_check_branch
          %139 = sbr.rel (%p137) target = $region16
        $region15: #{tpu_custom_call.1} parent=11 // pred_region
          _
        $region16: #{tpu_custom_call.1} parent=11 // pred_fallthru
          _
        // Predicated region
        $region17: #{tpu_custom_call.1} parent=11 // pred_check
          %p140 = pneg %p94
        $region18: #{tpu_custom_call.1} parent=11 // pred_check_branch
          %142 = sbr.rel (%p140) target = $region20
        $region19: #{tpu_custom_call.1} parent=11 // pred_region
          _
        $region20: #{tpu_custom_call.1} parent=11 // pred_fallthru
          _
      $region12: #{tpu_custom_call.1} parent=5 // pred_fallthru
        _
      %p143 = scmp.lt.s32.totalorder %s12, 2
      // Predicated region
      $region21: #{tpu_custom_call.1} parent=5 // pred_check
        %p144 = pneg %p143
      $region22: #{tpu_custom_call.1} parent=5 // pred_check_branch
        %146 = sbr.rel (%p144) target = $region24
      $region23: #{tpu_custom_call.1} parent=5 // pred_region
        // Predicated region
        $region25: #{tpu_custom_call.1} parent=23 // pred_check
          %p147 = pneg %p46
        $region26: #{tpu_custom_call.1} parent=23 // pred_check_branch
          %149 = sbr.rel (%p147) target = $region28
        $region27: #{tpu_custom_call.1} parent=23 // pred_region
          %s150 = smul.u32 2, %s20
          %p151 = scmp.lt.s32.totalorder %s19, 1
          %s152 = scalar_select %p151, %s19, 1
          %p153 = scmp.lt.s32.totalorder %s150, 1
          %s154 = scalar_select %p153, %s150, 1
          %s155 = smul.addr %s152, 10
          %s156 = sadd.s32 %s154, %s155
          %s157 = smul.addr %s156, 8
          %s158 = scalar_lea.vmem %s0, %s157
          %s159 = smul.u32 2, %s20
        $region28: #{tpu_custom_call.1} parent=23 // pred_fallthru
          _
      $region24: #{tpu_custom_call.1} parent=5 // pred_fallthru
        _
      %p160 = scmp.le.s32.totalorder 1, %s12
      %p161 = scmp.lt.s32.totalorder %s12, 3
      %p162 = pnand %p160, %p161
      %p163 = pneg %p162
      // Predicated region
      $region29: #{tpu_custom_call.1} parent=5 // pred_check
        _
      $region30: #{tpu_custom_call.1} parent=5 // pred_check_branch
        %165 = sbr.rel (%p162) target = $region32
      $region31: #{tpu_custom_call.1} parent=5 // pred_region
        %s166 = ssub.s32 %s12, 1
        %s167 = smul.u32 2, %s22
        %p168 = scmp.lt.s32.totalorder %s21, 1
        %s169 = scalar_select %p168, %s21, 1
        %p170 = scmp.lt.s32.totalorder %s167, 1
        %s171 = scalar_select %p170, %s167, 1
        %s172 = smul.addr %s169, 10
        %s173 = sadd.s32 %s171, %s172
        %s174 = smul.addr %s173, 8
        %s175 = scalar_lea.vmem %s0, %s174
        %p176 = pneg %p52
        %p177 = pneg %p49
        %p178 = pneg %p73
        %p179 = pneg %p70
        %p180 = pneg %p94
        %p181 = pneg %p91
        %p182 = pneg %p122
        %p183 = pneg %p119
        %s184 = sand.u32 %s109, 1
        %s185 = scalar_lea.sflag [#allocation3], %s184
        %s186 = sand.u32 %s109, 1
        %s187 = smul.addr %s186, 16
        %s188 = scalar_lea.vmem [#allocation2], %s187
        %s189 = smul.u32 2, %s22
        %p190 = scmp.lt.s32.totalorder %s21, 1
        %s191 = scalar_select %p190, %s21, 1
        %p192 = scmp.lt.s32.totalorder %s189, 1
        %s193 = scalar_select %p192, %s189, 1
        %s194 = smul.addr %s191, 10
        %s195 = sadd.s32 %s193, %s194
        %s196 = smul.addr %s195, 8
        %s197 = scalar_lea.vmem %s0, %s196
        %s198 = smul.u32 2, %s22
        %s199 = smul.u32 2, %s22
        %v200 = vld [vmem:[%s197] sm:$0xff]
        %v201 = vld [vmem:[%s197 + $0x8] sm:$0xff]
        %v202 = vld [vmem:[%s197 + $0x10] sm:$0xff]
        %v203 = vld [vmem:[%s197 + $0x18] sm:$0xff]
        %v204 = vld [vmem:[%s197 + $0x20] sm:$0xff]
        %v205 = vld [vmem:[%s197 + $0x28] sm:$0xff]
        %v206 = vld [vmem:[%s197 + $0x30] sm:$0xff]
        %v207 = vld [vmem:[%s197 + $0x38] sm:$0xff]
        %v208 = vld [vmem:[%s197 + $0x40] sm:$0xf]
        %v209 = vld [vmem:[%s197 + $0x48] sm:$0xf]
        %v210 = vld [vmem:[%s1] sm:$0xff]
        %v211 = vld [vmem:[%s2] sm:$0xff]
        %213 = vset.pattern.permute.xlu0 0
        %214 = vperm.xlu0 %213, %v211
        %v215 = vpop.permute.xlu0 %214
        %vm217 = vcmask 293888
        %v219 = vsel %vm217, %v210, 0
        %vm221 = vcmask 1043456
        %v223 = vsel %vm221, %v208, 0
        %v226 = vsel %vm221, %v209, 0
        %228 = vmatpush.msra.mxu0 0.0
        %229 = vmatpush.msra.mxu0 0.0
        %230 = vmatpush.msra.mxu0 0.0
        %231 = vmatpush.msra.mxu0 0.0
        %232 = vmatpush.msra.mxu0 0.0
        %233 = vmatpush.msra.mxu0 0.0
        %234 = vmatpush.msra.mxu0 0.0
        %235 = vmatpush.msra.mxu0 0.0
        %236 = vmatpush.msra.mxu0 0.0
        %237 = vmatpush.msra.mxu0 0.0
        %238 = vmatpush.msra.mxu0 0.0
        %239 = vmatpush.msra.mxu0 %v223
        %240 = vmatpush.msra.mxu0 %v206
        %241 = vmatpush.msra.mxu0 %v204
        %242 = vmatpush.msra.mxu0 %v202
        %243 = vmatpush.msra.mxu0 %v200
        %244 = vmatmul.f32.gmra.mxu0 %v219
        %v245 = vpop.f32.mrf.mxu0
        %v246 = vadd.f32 %v215, %v245
        %247 = vdwg.mxu0
        %248 = vmatpush.msra.mxu0 0.0
        %249 = vmatpush.msra.mxu0 0.0
        %250 = vmatpush.msra.mxu0 0.0
        %251 = vmatpush.msra.mxu0 0.0
        %252 = vmatpush.msra.mxu0 0.0
        %253 = vmatpush.msra.mxu0 0.0
        %254 = vmatpush.msra.mxu0 0.0
        %255 = vmatpush.msra.mxu0 0.0
        %256 = vmatpush.msra.mxu0 0.0
        %257 = vmatpush.msra.mxu0 0.0
        %258 = vmatpush.msra.mxu0 0.0
        %259 = vmatpush.msra.mxu0 %v226
        %260 = vmatpush.msra.mxu0 %v207
        %261 = vmatpush.msra.mxu0 %v205
        %262 = vmatpush.msra.mxu0 %v203
        %263 = vmatpush.msra.mxu0 %v201
        %264 = vmatmul.f32.gmra.mxu0 %v219
        %v265 = vpop.f32.mrf.mxu0
        %v266 = vadd.f32 %v215, %v265
        %267 = vdwg.mxu0
        %v268 = vmax.f32 %v246, 0.0
        %v269 = vmax.f32 %v266, 0.0
        %270 = vst [vmem:[%s188] sm:$0xff] %v268
        %271 = vst [vmem:[%s188 + $0x8] sm:$0xff] %v269
        %s272 = sand.u32 %s109, 1
        %s273 = scalar_lea.sflag [#allocation3], %s272
        %s274 = sand.u32 %s109, 1
        %s275 = smul.addr %s274, 16
        %s276 = scalar_lea.vmem [#allocation2], %s275
        // Predicated region
        $region33: #{tpu_custom_call.1} parent=31 // pred_check
          %p277 = pneg %p119
        $region34: #{tpu_custom_call.1} parent=31 // pred_check_branch
          %279 = sbr.rel (%p277) target = $region36
        $region35: #{tpu_custom_call.1} parent=31 // pred_region
          %s280 = smul.u32 2, %s22
          %282 = vsyncadd %s273, 0
          %s283 = smul.addr %s21, 2
          %s284 = sadd.s32 %s280, %s283
          %s285 = smul.addr %s284, 8
          %s286 = scalar_lea.hbm %s3, %s285
          %s288 = sshll.u32 %s276, 4
          %s289 = int_to_ptr.vmem [resolvable:$true] %s288
          %s290 = sshll.u32 %s286, 4
          %s291 = int_to_ptr.hbm [resolvable:$true] %s290
          %293 = dma.vmem_to_hbm [thread:$0]  %s289, 256, %s291, %s273
        $region36: #{tpu_custom_call.1} parent=31 // pred_fallthru
          _
      $region32: #{tpu_custom_call.1} parent=5 // pred_fallthru
        _
      %p294 = scmp.le.s32.totalorder 2, %s12
      // Predicated region
      $region37: #{tpu_custom_call.1} parent=5 // pred_check
        %p295 = pneg %p294
      $region38: #{tpu_custom_call.1} parent=5 // pred_check_branch
        %297 = sbr.rel (%p295) target = $region40
      $region39: #{tpu_custom_call.1} parent=5 // pred_region
        %s298 = ssub.s32 %s12, 2
        // Predicated region
        $region41: #{tpu_custom_call.1} parent=39 // pred_check
          %p299 = pneg %p125
        $region42: #{tpu_custom_call.1} parent=39 // pred_check_branch
          %301 = sbr.rel (%p299) target = $region44
        $region43: #{tpu_custom_call.1} parent=39 // pred_region
          %s302 = sand.u32 %s110, 1
          %s303 = scalar_lea.sflag [#allocation3], %s302
          %s304 = sand.u32 %s110, 1
          %s305 = smul.addr %s304, 16
          %s306 = scalar_lea.vmem [#allocation2], %s305
          %308 = dma.done %s303, 256
        $region44: #{tpu_custom_call.1} parent=39 // pred_fallthru
          _
      $region40: #{tpu_custom_call.1} parent=5 // pred_fallthru
        _
    $region6: #{tpu_custom_call.1} parent=1 // loop_footer
      %s16 = sadd.s32 1, %s12
    $region7: #{tpu_custom_call.1} parent=1 // loop_footer_branch
      %11 = sbr.rel target = $region3
    $region8: #{tpu_custom_call.1} parent=1 // loop_exit
      _
    %309 = vsyncpa [#allocation3], 1
    %s310 = scalar_lea.sflag [#allocation3], 1
    %311 = vsyncpa %s310, 1

</llo_original>
